<compile_context>
chip_gen: v7x
topology: tpu7x:2x2x1
jax: 0.10.0
libtpu: 0.0.40
codegen_flags: <defaults>
</compile_context>

<pallas_src>
import functools

import numpy as np

import jax
import jax.numpy as jnp
from jax import lax
from jax.experimental import pallas as pl
from jax.experimental.pallas import tpu as pltpu


def _arm_kernel(x_ref, w_ref, mask_ref, scale1_ref, bias1_ref, wa_ref,
                scale2_ref, bias2_ref, out_ref, *, H, W, conv_dtype):
    # x_ref     : (1, Cin, H*W)    input, NCHW with spatial flattened on lanes
    # w_ref     : (9, Cout, Cin)   3x3 conv taps, tap t = i*3 + j (oy=i-1, ox=j-1)
    # mask_ref  : (9, H*W)         0/1 validity mask per tap (zero padding + wrap)
    # scale1/bias1 : (Cout, 1)     folded eval-mode BN of the ConvModule
    # wa_ref    : (Cout, Cout)     1x1 conv_atten weight (no bias)
    # scale2/bias2 : (Cout, 1)     folded eval-mode bn_atten
    # out_ref   : (1, Cout, H*W)
    HW = H * W
    cout = out_ref.shape[1]

    x = x_ref[0]                         # (Cin, HW) f32
    masks = mask_ref[...]                # (9, HW)   f32 0/1

    # 3x3 conv, stride 1, pad 1  ==  9 shifted (Cout, Cin) @ (Cin, HW) MXU matmuls.
    acc = jnp.zeros((cout, HW), jnp.float32)
    for i in range(3):                   # kernel row -> oy = i - 1
        for j in range(3):               # kernel col -> ox = j - 1
            t = i * 3 + j
            s = (i - 1) * W + (j - 1)    # flat lane offset read by this tap
            shifted = x if s == 0 else pltpu.roll(x, shift=(-s) % HW, axis=1)
            # Mask wrap-around / out-of-image positions (zero padding), then cast
            # to bf16 for the MXU while accumulating in f32.
            tap = (shifted * masks[t:t + 1, :]).astype(conv_dtype)     # (Cin, HW)
            acc = acc + jnp.dot(w_ref[t], tap,
                                preferred_element_type=jnp.float32)    # (Cout, HW)

    # Folded eval-mode BatchNorm + ReLU (f32 epilogue).
    feat = jnp.maximum(acc * scale1_ref[...] + bias1_ref[...], 0.0)    # (Cout, HW)

    # atten = sigmoid(bn_atten(conv_atten(global_avg_pool(feat)))).
    # conv_atten is linear, so fold it before the pool: mean(Wa@feat) == Wa@mean(feat),
    # keeping the matmul lane-dense (N = HW) instead of N = 1.
    proj = jnp.dot(wa_ref[...], feat, preferred_element_type=jnp.float32)  # (Cout, HW)
    atten = jnp.sum(proj, axis=1, keepdims=True) * (1.0 / HW)              # (Cout, 1)
    gate = jax.nn.sigmoid(atten * scale2_ref[...] + bias2_ref[...])        # (Cout, 1)

    # out = feat * atten  (no residual in AttentionRefinementModule).
    out_ref[0] = (feat * gate).astype(out_ref.dtype)


def _tap_masks(H, W):
    """Per-tap 0/1 validity masks on the flattened H*W lane axis (zero padding)."""
    masks = np.zeros((9, H * W), np.float32)
    for i in range(3):
        for j in range(3):
            oy, ox = i - 1, j - 1
            m = np.zeros((H, W), np.float32)
            m[max(0, -oy):min(H, H - oy), max(0, -ox):min(W, W - ox)] = 1.0
            masks[i * 3 + j] = m.reshape(-1)
    return jnp.asarray(masks)


def attention_refinement_forward(x, params, conv_dtype=jnp.bfloat16):
    """x: (B, Cin, H, W) float32 NCHW. Returns (B, Cout, H, W) float32 NCHW."""
    B, Cin, H, W = x.shape
    HW = H * W
    Cout = params['w_conv'].shape[0]

    # Free contiguous reshape -- no transpose / pad / concat HBM passes.
    x_flat = x.reshape(B, Cin, HW)

    # 3x3 conv weights as 9 per-tap (Cout, Cin) matrices in the MXU dtype.
    w_taps = jnp.transpose(params['w_conv'], (2, 3, 0, 1)).reshape(9, Cout, Cin)
    w_taps = w_taps.astype(conv_dtype)
    masks = _tap_masks(H, W)

    scale1 = params['scale1'].reshape(Cout, 1).astype(jnp.float32)
    bias1 = params['bias1'].reshape(Cout, 1).astype(jnp.float32)
    wa = params['wa'].astype(jnp.float32)
    scale2 = params['scale2'].reshape(Cout, 1).astype(jnp.float32)
    bias2 = params['bias2'].reshape(Cout, 1).astype(jnp.float32)

    kernel = functools.partial(_arm_kernel, H=H, W=W, conv_dtype=conv_dtype)

    # TODO(synk): at production sizes (H=W~96+, Cout=256) add a row-strip grid axis
    # with a two-phase global pool so blocks fit v7x's 64 MiB VMEM; whole-image
    # per-batch blocks are fine at these small shapes.
    out_flat = pl.pallas_call(
        kernel,
        out_shape=jax.ShapeDtypeStruct((B, Cout, HW), x.dtype),
        grid_spec=pltpu.PrefetchScalarGridSpec(
            num_scalar_prefetch=0,
            grid=(B,),
            in_specs=[
                pl.BlockSpec((1, Cin, HW), lambda b: (b, 0, 0)),
                pl.BlockSpec((9, Cout, Cin), lambda b: (0, 0, 0)),
                pl.BlockSpec((9, HW), lambda b: (0, 0)),
                pl.BlockSpec((Cout, 1), lambda b: (0, 0)),
                pl.BlockSpec((Cout, 1), lambda b: (0, 0)),
                pl.BlockSpec((Cout, Cout), lambda b: (0, 0)),
                pl.BlockSpec((Cout, 1), lambda b: (0, 0)),
                pl.BlockSpec((Cout, 1), lambda b: (0, 0)),
            ],
            out_specs=pl.BlockSpec((1, Cout, HW), lambda b: (b, 0, 0)),
        ),
        compiler_params=pltpu.CompilerParams(
            dimension_semantics=("parallel",),        # batch across TensorCores
            vmem_limit_bytes=32 * 1024 * 1024,        # explicit; raise / tile at prod sizes
        ),
    )(x_flat, w_taps, masks, scale1, bias1, wa, scale2, bias2)

    return out_flat.reshape(B, Cout, H, W)            # free reshape back to NCHW


def init_params(key, in_channel, out_channel):
    """Deterministic synthetic parameters matching the module's __init__ shapes."""
    k = jax.random.split(key, 10)
    eps = 1e-5
    # ConvModule 3x3 conv (bias=False, followed by BN), stored OIHW like PyTorch.
    w_conv = 0.1 * jax.random.normal(k[0], (out_channel, in_channel, 3, 3), jnp.float32)
    gamma1 = 1.0 + 0.1 * jax.random.normal(k[1], (out_channel,), jnp.float32)
    beta1 = 0.1 * jax.random.normal(k[2], (out_channel,), jnp.float32)
    mean1 = 0.1 * jax.random.normal(k[3], (out_channel,), jnp.float32)
    var1 = 1.0 + jnp.abs(jax.random.normal(k[4], (out_channel,), jnp.float32))
    scale1 = gamma1 / jnp.sqrt(var1 + eps)
    bias1 = beta1 - mean1 * scale1
    # conv_atten: 1x1 conv, bias=False -> (Cout, Cout); bn_atten folded the same way.
    wa = 0.2 * jax.random.normal(k[5], (out_channel, out_channel), jnp.float32)
    gamma2 = 1.0 + 0.1 * jax.random.normal(k[6], (out_channel,), jnp.float32)
    beta2 = 0.1 * jax.random.normal(k[7], (out_channel,), jnp.float32)
    mean2 = 0.1 * jax.random.normal(k[8], (out_channel,), jnp.float32)
    var2 = 1.0 + jnp.abs(jax.random.normal(k[9], (out_channel,), jnp.float32))
    scale2 = gamma2 / jnp.sqrt(var2 + eps)
    bias2 = beta2 - mean2 * scale2
    return dict(w_conv=w_conv, scale1=scale1, bias1=bias1,
                wa=wa, scale2=scale2, bias2=bias2)


def reference_forward(x, params, conv_dtype=jnp.bfloat16):
    """Pure-JAX reference of the PyTorch forward (NCHW in/out, eval-mode BN).

    The conv operands are rounded to the same bf16 compute dtype as the kernel's
    MXU path (f32 accumulation), so the comparison is apples-to-apples.
    """
    xc = x.astype(conv_dtype).astype(jnp.float32)
    wc = params['w_conv'].astype(conv_dtype).astype(jnp.float32)
    conv = lax.conv_general_dilated(
        xc, wc, window_strides=(1, 1), padding=((1, 1), (1, 1)),
        dimension_numbers=('NCHW', 'OIHW', 'NCHW'))
    s1 = params['scale1'][None, :, None, None]
    b1 = params['bias1'][None, :, None, None]
    feat = jnp.maximum(conv * s1 + b1, 0.0)
    atten = jnp.mean(feat, axis=(2, 3), keepdims=True)             # global avg pool
    a = jnp.einsum('oc,bcxy->boxy', params['wa'], atten)           # conv_atten (1x1)
    s2 = params['scale2'][None, :, None, None]
    b2 = params['bias2'][None, :, None, None]
    gate = jax.nn.sigmoid(a * s2 + b2)                             # bn_atten + sigmoid
    return feat * gate


if __name__ == "__main__":
    key = jax.random.PRNGKey(0)
    k_x, k_par = jax.random.split(key)

    B, Cin, Hs, Ws = 2, 4, 16, 16
    Cout = 8

    x = jax.random.normal(k_x, (B, Cin, Hs, Ws), jnp.float32)
    params = init_params(k_par, Cin, Cout)

    out = attention_refinement_forward(x, params)
    out = jax.block_until_ready(out)

    ref = jax.block_until_ready(reference_forward(x, params))
    assert out.shape == (B, Cout, Hs, Ws), out.shape
    assert jnp.allclose(out, ref, atol=1e-4, rtol=1e-4), float(jnp.max(jnp.abs(out - ref)))

    print("KERNEL_OK")
</pallas_src>

<mosaic_0001>
module attributes {stable_mosaic.version = 11 : i64} {
  func.func @_arm_kernel(%arg0: i32, %arg1: memref<1x4x256xf32, #tpu.memory_space<vmem>>, %arg2: memref<9x8x4xbf16, #tpu.memory_space<vmem>>, %arg3: memref<9x256xf32, #tpu.memory_space<vmem>>, %arg4: memref<8x1xf32, #tpu.memory_space<vmem>>, %arg5: memref<8x1xf32, #tpu.memory_space<vmem>>, %arg6: memref<8x8xf32, #tpu.memory_space<vmem>>, %arg7: memref<8x1xf32, #tpu.memory_space<vmem>>, %arg8: memref<8x1xf32, #tpu.memory_space<vmem>>, %arg9: memref<1x8x256xf32, #tpu.memory_space<vmem>>) attributes {dimension_semantics = [#tpu.dimension_semantics<parallel>], iteration_bounds = array<i64: 2>, scalar_prefetch = 0 : i64, scratch_operands = 0 : i64, tpu.core_type = #tpu.core_type<tc>, window_params = [{transform_indices = @transform_0, window_bounds = array<i64: 1, 4, 256>}, {pipeline_mode = #tpu.pipeline_mode<synchronous>, transform_indices = @transform_1, window_bounds = array<i64: 9, 8, 4>}, {pipeline_mode = #tpu.pipeline_mode<synchronous>, transform_indices = @transform_2, window_bounds = array<i64: 9, 256>}, {pipeline_mode = #tpu.pipeline_mode<synchronous>, transform_indices = @transform_3, window_bounds = array<i64: 8, 1>}, {pipeline_mode = #tpu.pipeline_mode<synchronous>, transform_indices = @transform_4, window_bounds = array<i64: 8, 1>}, {pipeline_mode = #tpu.pipeline_mode<synchronous>, transform_indices = @transform_5, window_bounds = array<i64: 8, 8>}, {pipeline_mode = #tpu.pipeline_mode<synchronous>, transform_indices = @transform_6, window_bounds = array<i64: 8, 1>}, {pipeline_mode = #tpu.pipeline_mode<synchronous>, transform_indices = @transform_7, window_bounds = array<i64: 8, 1>}, {transform_indices = @transform_8, window_bounds = array<i64: 1, 8, 256>}]} {
    %c0 = arith.constant 0 : index
    %c0_0 = arith.constant 0 : index
    %c0_1 = arith.constant 0 : index
    %0 = vector.load %arg1[%c0, %c0_0, %c0_1] : memref<1x4x256xf32, #tpu.memory_space<vmem>>, vector<1x4x256xf32>
    %1 = vector.shape_cast %0 : vector<1x4x256xf32> to vector<4x256xf32>
    %c0_2 = arith.constant 0 : index
    %c0_3 = arith.constant 0 : index
    %2 = vector.load %arg3[%c0_2, %c0_3] : memref<9x256xf32, #tpu.memory_space<vmem>>, vector<9x256xf32>
    %cst = arith.constant 0.000000e+00 : f32
    %3 = vector.broadcast %cst : f32 to vector<8x256xf32>
    %c17_i32 = arith.constant 17 : i32
    %4 = tpu.dynamic_rotate %1 by %c17_i32 dim 1 : vector<4x256xf32>, i32 -> vector<4x256xf32>
    %5 = vector.extract_strided_slice %2 {offsets = [0, 0], sizes = [1, 256], strides = [1, 1]} : vector<9x256xf32> to vector<1x256xf32>
    %6 = vector.broadcast %5 : vector<1x256xf32> to vector<4x256xf32>
    %7 = arith.mulf %4, %6 : vector<4x256xf32>
    %8 = arith.truncf %7 : vector<4x256xf32> to vector<4x256xbf16>
    %c0_4 = arith.constant 0 : index
    %c0_5 = arith.constant 0 : index
    %c0_6 = arith.constant 0 : index
    %9 = vector.load %arg2[%c0_4, %c0_5, %c0_6] : memref<9x8x4xbf16, #tpu.memory_space<vmem>>, vector<1x8x4xbf16>
    %10 = vector.shape_cast %9 : vector<1x8x4xbf16> to vector<8x4xbf16>
    %cst_7 = arith.constant dense<0.000000e+00> : vector<8x256xf32>
    %11 = tpu.matmul %10, %8, %cst_7 {dimension_numbers = #tpu.dot_dimension_numbers<[1], [0], [0], [1], [0, 0, 1, 1], [], []>} : vector<8x4xbf16>, vector<4x256xbf16>, vector<8x256xf32> -> vector<8x256xf32>
    %12 = arith.addf %3, %11 : vector<8x256xf32>
    %c16_i32 = arith.constant 16 : i32
    %13 = tpu.dynamic_rotate %1 by %c16_i32 dim 1 : vector<4x256xf32>, i32 -> vector<4x256xf32>
    %14 = vector.extract_strided_slice %2 {offsets = [1, 0], sizes = [1, 256], strides = [1, 1]} : vector<9x256xf32> to vector<1x256xf32>
    %15 = vector.broadcast %14 : vector<1x256xf32> to vector<4x256xf32>
    %16 = arith.mulf %13, %15 : vector<4x256xf32>
    %17 = arith.truncf %16 : vector<4x256xf32> to vector<4x256xbf16>
    %c1 = arith.constant 1 : index
    %c0_8 = arith.constant 0 : index
    %c0_9 = arith.constant 0 : index
    %18 = vector.load %arg2[%c1, %c0_8, %c0_9] : memref<9x8x4xbf16, #tpu.memory_space<vmem>>, vector<1x8x4xbf16>
    %19 = vector.shape_cast %18 : vector<1x8x4xbf16> to vector<8x4xbf16>
    %cst_10 = arith.constant dense<0.000000e+00> : vector<8x256xf32>
    %20 = tpu.matmul %19, %17, %cst_10 {dimension_numbers = #tpu.dot_dimension_numbers<[1], [0], [0], [1], [0, 0, 1, 1], [], []>} : vector<8x4xbf16>, vector<4x256xbf16>, vector<8x256xf32> -> vector<8x256xf32>
    %21 = arith.addf %12, %20 : vector<8x256xf32>
    %c15_i32 = arith.constant 15 : i32
    %22 = tpu.dynamic_rotate %1 by %c15_i32 dim 1 : vector<4x256xf32>, i32 -> vector<4x256xf32>
    %23 = vector.extract_strided_slice %2 {offsets = [2, 0], sizes = [1, 256], strides = [1, 1]} : vector<9x256xf32> to vector<1x256xf32>
    %24 = vector.broadcast %23 : vector<1x256xf32> to vector<4x256xf32>
    %25 = arith.mulf %22, %24 : vector<4x256xf32>
    %26 = arith.truncf %25 : vector<4x256xf32> to vector<4x256xbf16>
    %c2 = arith.constant 2 : index
    %c0_11 = arith.constant 0 : index
    %c0_12 = arith.constant 0 : index
    %27 = vector.load %arg2[%c2, %c0_11, %c0_12] : memref<9x8x4xbf16, #tpu.memory_space<vmem>>, vector<1x8x4xbf16>
    %28 = vector.shape_cast %27 : vector<1x8x4xbf16> to vector<8x4xbf16>
    %cst_13 = arith.constant dense<0.000000e+00> : vector<8x256xf32>
    %29 = tpu.matmul %28, %26, %cst_13 {dimension_numbers = #tpu.dot_dimension_numbers<[1], [0], [0], [1], [0, 0, 1, 1], [], []>} : vector<8x4xbf16>, vector<4x256xbf16>, vector<8x256xf32> -> vector<8x256xf32>
    %30 = arith.addf %21, %29 : vector<8x256xf32>
    %c1_i32 = arith.constant 1 : i32
    %31 = tpu.dynamic_rotate %1 by %c1_i32 dim 1 : vector<4x256xf32>, i32 -> vector<4x256xf32>
    %32 = vector.extract_strided_slice %2 {offsets = [3, 0], sizes = [1, 256], strides = [1, 1]} : vector<9x256xf32> to vector<1x256xf32>
    %33 = vector.broadcast %32 : vector<1x256xf32> to vector<4x256xf32>
    %34 = arith.mulf %31, %33 : vector<4x256xf32>
    %35 = arith.truncf %34 : vector<4x256xf32> to vector<4x256xbf16>
    %c3 = arith.constant 3 : index
    %c0_14 = arith.constant 0 : index
    %c0_15 = arith.constant 0 : index
    %36 = vector.load %arg2[%c3, %c0_14, %c0_15] : memref<9x8x4xbf16, #tpu.memory_space<vmem>>, vector<1x8x4xbf16>
    %37 = vector.shape_cast %36 : vector<1x8x4xbf16> to vector<8x4xbf16>
    %cst_16 = arith.constant dense<0.000000e+00> : vector<8x256xf32>
    %38 = tpu.matmul %37, %35, %cst_16 {dimension_numbers = #tpu.dot_dimension_numbers<[1], [0], [0], [1], [0, 0, 1, 1], [], []>} : vector<8x4xbf16>, vector<4x256xbf16>, vector<8x256xf32> -> vector<8x256xf32>
    %39 = arith.addf %30, %38 : vector<8x256xf32>
    %40 = vector.extract_strided_slice %2 {offsets = [4, 0], sizes = [1, 256], strides = [1, 1]} : vector<9x256xf32> to vector<1x256xf32>
    %41 = vector.broadcast %40 : vector<1x256xf32> to vector<4x256xf32>
    %42 = arith.mulf %1, %41 : vector<4x256xf32>
    %43 = arith.truncf %42 : vector<4x256xf32> to vector<4x256xbf16>
    %c4 = arith.constant 4 : index
    %c0_17 = arith.constant 0 : index
    %c0_18 = arith.constant 0 : index
    %44 = vector.load %arg2[%c4, %c0_17, %c0_18] : memref<9x8x4xbf16, #tpu.memory_space<vmem>>, vector<1x8x4xbf16>
    %45 = vector.shape_cast %44 : vector<1x8x4xbf16> to vector<8x4xbf16>
    %cst_19 = arith.constant dense<0.000000e+00> : vector<8x256xf32>
    %46 = tpu.matmul %45, %43, %cst_19 {dimension_numbers = #tpu.dot_dimension_numbers<[1], [0], [0], [1], [0, 0, 1, 1], [], []>} : vector<8x4xbf16>, vector<4x256xbf16>, vector<8x256xf32> -> vector<8x256xf32>
    %47 = arith.addf %39, %46 : vector<8x256xf32>
    %c255_i32 = arith.constant 255 : i32
    %48 = tpu.dynamic_rotate %1 by %c255_i32 dim 1 : vector<4x256xf32>, i32 -> vector<4x256xf32>
    %49 = vector.extract_strided_slice %2 {offsets = [5, 0], sizes = [1, 256], strides = [1, 1]} : vector<9x256xf32> to vector<1x256xf32>
    %50 = vector.broadcast %49 : vector<1x256xf32> to vector<4x256xf32>
    %51 = arith.mulf %48, %50 : vector<4x256xf32>
    %52 = arith.truncf %51 : vector<4x256xf32> to vector<4x256xbf16>
    %c5 = arith.constant 5 : index
    %c0_20 = arith.constant 0 : index
    %c0_21 = arith.constant 0 : index
    %53 = vector.load %arg2[%c5, %c0_20, %c0_21] : memref<9x8x4xbf16, #tpu.memory_space<vmem>>, vector<1x8x4xbf16>
    %54 = vector.shape_cast %53 : vector<1x8x4xbf16> to vector<8x4xbf16>
    %cst_22 = arith.constant dense<0.000000e+00> : vector<8x256xf32>
    %55 = tpu.matmul %54, %52, %cst_22 {dimension_numbers = #tpu.dot_dimension_numbers<[1], [0], [0], [1], [0, 0, 1, 1], [], []>} : vector<8x4xbf16>, vector<4x256xbf16>, vector<8x256xf32> -> vector<8x256xf32>
    %56 = arith.addf %47, %55 : vector<8x256xf32>
    %c241_i32 = arith.constant 241 : i32
    %57 = tpu.dynamic_rotate %1 by %c241_i32 dim 1 : vector<4x256xf32>, i32 -> vector<4x256xf32>
    %58 = vector.extract_strided_slice %2 {offsets = [6, 0], sizes = [1, 256], strides = [1, 1]} : vector<9x256xf32> to vector<1x256xf32>
    %59 = vector.broadcast %58 : vector<1x256xf32> to vector<4x256xf32>
    %60 = arith.mulf %57, %59 : vector<4x256xf32>
    %61 = arith.truncf %60 : vector<4x256xf32> to vector<4x256xbf16>
    %c6 = arith.constant 6 : index
    %c0_23 = arith.constant 0 : index
    %c0_24 = arith.constant 0 : index
    %62 = vector.load %arg2[%c6, %c0_23, %c0_24] : memref<9x8x4xbf16, #tpu.memory_space<vmem>>, vector<1x8x4xbf16>
    %63 = vector.shape_cast %62 : vector<1x8x4xbf16> to vector<8x4xbf16>
    %cst_25 = arith.constant dense<0.000000e+00> : vector<8x256xf32>
    %64 = tpu.matmul %63, %61, %cst_25 {dimension_numbers = #tpu.dot_dimension_numbers<[1], [0], [0], [1], [0, 0, 1, 1], [], []>} : vector<8x4xbf16>, vector<4x256xbf16>, vector<8x256xf32> -> vector<8x256xf32>
    %65 = arith.addf %56, %64 : vector<8x256xf32>
    %c240_i32 = arith.constant 240 : i32
    %66 = tpu.dynamic_rotate %1 by %c240_i32 dim 1 : vector<4x256xf32>, i32 -> vector<4x256xf32>
    %67 = vector.extract_strided_slice %2 {offsets = [7, 0], sizes = [1, 256], strides = [1, 1]} : vector<9x256xf32> to vector<1x256xf32>
    %68 = vector.broadcast %67 : vector<1x256xf32> to vector<4x256xf32>
    %69 = arith.mulf %66, %68 : vector<4x256xf32>
    %70 = arith.truncf %69 : vector<4x256xf32> to vector<4x256xbf16>
    %c7 = arith.constant 7 : index
    %c0_26 = arith.constant 0 : index
    %c0_27 = arith.constant 0 : index
    %71 = vector.load %arg2[%c7, %c0_26, %c0_27] : memref<9x8x4xbf16, #tpu.memory_space<vmem>>, vector<1x8x4xbf16>
    %72 = vector.shape_cast %71 : vector<1x8x4xbf16> to vector<8x4xbf16>
    %cst_28 = arith.constant dense<0.000000e+00> : vector<8x256xf32>
    %73 = tpu.matmul %72, %70, %cst_28 {dimension_numbers = #tpu.dot_dimension_numbers<[1], [0], [0], [1], [0, 0, 1, 1], [], []>} : vector<8x4xbf16>, vector<4x256xbf16>, vector<8x256xf32> -> vector<8x256xf32>
    %74 = arith.addf %65, %73 : vector<8x256xf32>
    %c239_i32 = arith.constant 239 : i32
    %75 = tpu.dynamic_rotate %1 by %c239_i32 dim 1 : vector<4x256xf32>, i32 -> vector<4x256xf32>
    %76 = vector.extract_strided_slice %2 {offsets = [8, 0], sizes = [1, 256], strides = [1, 1]} : vector<9x256xf32> to vector<1x256xf32>
    %77 = vector.broadcast %76 : vector<1x256xf32> to vector<4x256xf32>
    %78 = arith.mulf %75, %77 : vector<4x256xf32>
    %79 = arith.truncf %78 : vector<4x256xf32> to vector<4x256xbf16>
    %c8 = arith.constant 8 : index
    %c0_29 = arith.constant 0 : index
    %c0_30 = arith.constant 0 : index
    %80 = vector.load %arg2[%c8, %c0_29, %c0_30] : memref<9x8x4xbf16, #tpu.memory_space<vmem>>, vector<1x8x4xbf16>
    %81 = vector.shape_cast %80 : vector<1x8x4xbf16> to vector<8x4xbf16>
    %cst_31 = arith.constant dense<0.000000e+00> : vector<8x256xf32>
    %82 = tpu.matmul %81, %79, %cst_31 {dimension_numbers = #tpu.dot_dimension_numbers<[1], [0], [0], [1], [0, 0, 1, 1], [], []>} : vector<8x4xbf16>, vector<4x256xbf16>, vector<8x256xf32> -> vector<8x256xf32>
    %83 = arith.addf %74, %82 : vector<8x256xf32>
    %c0_32 = arith.constant 0 : index
    %c0_33 = arith.constant 0 : index
    %84 = vector.load %arg4[%c0_32, %c0_33] : memref<8x1xf32, #tpu.memory_space<vmem>>, vector<8x1xf32>
    %85 = vector.broadcast %84 : vector<8x1xf32> to vector<8x256xf32>
    %86 = arith.mulf %83, %85 : vector<8x256xf32>
    %c0_34 = arith.constant 0 : index
    %c0_35 = arith.constant 0 : index
    %87 = vector.load %arg5[%c0_34, %c0_35] : memref<8x1xf32, #tpu.memory_space<vmem>>, vector<8x1xf32>
    %88 = vector.broadcast %87 : vector<8x1xf32> to vector<8x256xf32>
    %89 = arith.addf %86, %88 : vector<8x256xf32>
    %cst_36 = arith.constant 0.000000e+00 : f32
    %90 = vector.broadcast %cst_36 : f32 to vector<8x256xf32>
    %91 = arith.maximumf %89, %90 : vector<8x256xf32>
    %c0_37 = arith.constant 0 : index
    %c0_38 = arith.constant 0 : index
    %92 = vector.load %arg6[%c0_37, %c0_38] : memref<8x8xf32, #tpu.memory_space<vmem>>, vector<8x8xf32>
    %cst_39 = arith.constant dense<0.000000e+00> : vector<8x256xf32>
    %93 = tpu.matmul %92, %91, %cst_39 {dimension_numbers = #tpu.dot_dimension_numbers<[1], [0], [0], [1], [0, 0, 1, 1], [], []>} : vector<8x8xf32>, vector<8x256xf32>, vector<8x256xf32> -> vector<8x256xf32>
    %cst_40 = arith.constant dense<0.000000e+00> : vector<8xf32>
    %94 = vector.multi_reduction <add>, %93, %cst_40 [1] : vector<8x256xf32> to vector<8xf32>
    %95 = vector.shape_cast %94 : vector<8xf32> to vector<8x1xf32>
    %cst_41 = arith.constant 3.906250e-03 : f32
    %96 = vector.broadcast %cst_41 : f32 to vector<8x1xf32>
    %97 = arith.mulf %95, %96 : vector<8x1xf32>
    %c0_42 = arith.constant 0 : index
    %c0_43 = arith.constant 0 : index
    %98 = vector.load %arg7[%c0_42, %c0_43] : memref<8x1xf32, #tpu.memory_space<vmem>>, vector<8x1xf32>
    %99 = arith.mulf %97, %98 : vector<8x1xf32>
    %c0_44 = arith.constant 0 : index
    %c0_45 = arith.constant 0 : index
    %100 = vector.load %arg8[%c0_44, %c0_45] : memref<8x1xf32, #tpu.memory_space<vmem>>, vector<8x1xf32>
    %101 = arith.addf %99, %100 : vector<8x1xf32>
    %102 = arith.negf %101 : vector<8x1xf32>
    %103 = math.exp %102 : vector<8x1xf32>
    %cst_46 = arith.constant 1.000000e+00 : f32
    %104 = vector.broadcast %cst_46 : f32 to vector<8x1xf32>
    %105 = arith.addf %104, %103 : vector<8x1xf32>
    %106 = arith.divf %104, %105 : vector<8x1xf32>
    %107 = vector.broadcast %106 : vector<8x1xf32> to vector<8x256xf32>
    %108 = arith.mulf %91, %107 : vector<8x256xf32>
    %c0_47 = arith.constant 0 : index
    %c0_48 = arith.constant 0 : index
    %c0_49 = arith.constant 0 : index
    %109 = vector.load %arg9[%c0_47, %c0_48, %c0_49] : memref<1x8x256xf32, #tpu.memory_space<vmem>>, vector<1x8x256xf32>
    %110 = vector.shape_cast %109 : vector<1x8x256xf32> to vector<8x256xf32>
    %111 = vector.shape_cast %108 : vector<8x256xf32> to vector<1x8x256xf32>
    tpu.vector_store %arg9[%c0_47, %c0_48, %c0_49], %111 {strides = array<i32>} : memref<1x8x256xf32, #tpu.memory_space<vmem>>, vector<1x8x256xf32>,
    return
  }
  func.func @transform_0(%arg0: i32) -> (i32, i32, i32) {
    %c0_i32 = arith.constant 0 : i32
    %c0_i32_0 = arith.constant 0 : i32
    %c0_i32_1 = arith.constant 0 : i32
    return %arg0, %c0_i32, %c0_i32_0 : i32, i32, i32
  }
  func.func @transform_1(%arg0: i32) -> (i32, i32, i32) {
    %c0_i32 = arith.constant 0 : i32
    %c0_i32_0 = arith.constant 0 : i32
    %c0_i32_1 = arith.constant 0 : i32
    %c0_i32_2 = arith.constant 0 : i32
    return %c0_i32, %c0_i32_0, %c0_i32_1 : i32, i32, i32
  }
  func.func @transform_2(%arg0: i32) -> (i32, i32) {
    %c0_i32 = arith.constant 0 : i32
    %c0_i32_0 = arith.constant 0 : i32
    %c0_i32_1 = arith.constant 0 : i32
    return %c0_i32, %c0_i32_0 : i32, i32
  }
  func.func @transform_3(%arg0: i32) -> (i32, i32) {
    %c0_i32 = arith.constant 0 : i32
    %c0_i32_0 = arith.constant 0 : i32
    %c0_i32_1 = arith.constant 0 : i32
    return %c0_i32, %c0_i32_0 : i32, i32
  }
  func.func @transform_4(%arg0: i32) -> (i32, i32) {
    %c0_i32 = arith.constant 0 : i32
    %c0_i32_0 = arith.constant 0 : i32
    %c0_i32_1 = arith.constant 0 : i32
    return %c0_i32, %c0_i32_0 : i32, i32
  }
  func.func @transform_5(%arg0: i32) -> (i32, i32) {
    %c0_i32 = arith.constant 0 : i32
    %c0_i32_0 = arith.constant 0 : i32
    %c0_i32_1 = arith.constant 0 : i32
    return %c0_i32, %c0_i32_0 : i32, i32
  }
  func.func @transform_6(%arg0: i32) -> (i32, i32) {
    %c0_i32 = arith.constant 0 : i32
    %c0_i32_0 = arith.constant 0 : i32
    %c0_i32_1 = arith.constant 0 : i32
    return %c0_i32, %c0_i32_0 : i32, i32
  }
  func.func @transform_7(%arg0: i32) -> (i32, i32) {
    %c0_i32 = arith.constant 0 : i32
    %c0_i32_0 = arith.constant 0 : i32
    %c0_i32_1 = arith.constant 0 : i32
    return %c0_i32, %c0_i32_0 : i32, i32
  }
  func.func @transform_8(%arg0: i32) -> (i32, i32, i32) {
    %c0_i32 = arith.constant 0 : i32
    %c0_i32_0 = arith.constant 0 : i32
    %c0_i32_1 = arith.constant 0 : i32
    return %arg0, %c0_i32, %c0_i32_0 : i32, i32, i32
  }
}

</mosaic_0001>

<llo_original>
// kernel: tpu_custom_call.1
$region0: #{tpu_custom_call.1}
  #allocation0 [shape = 'u32[]', space=smem, size = 0x4, offset = 0x4, fixed_abs, tag = 'smem constant byte address 0x4 - core index']
  #allocation1 [shape = 'u32[144,128]{1,0:T(1,128)}', space=vmem, size = 0x12000, scoped, tag = 'internal scratch']
  %s0 = inlined_call_operand.vmem [shape: f32[2,4,256], index: 0, kind: input, shape index: {}]
  %s1 = inlined_call_operand.vmem [shape: bf16[9,8,4], index: 1, kind: input, shape index: {}]
  %s2 = inlined_call_operand.vmem [shape: f32[9,256], index: 2, kind: input, shape index: {}]
  %s3 = inlined_call_operand.vmem [shape: f32[8,1], index: 3, kind: input, shape index: {}]
  %s4 = inlined_call_operand.vmem [shape: f32[8,1], index: 4, kind: input, shape index: {}]
  %s5 = inlined_call_operand.vmem [shape: f32[8,8], index: 5, kind: input, shape index: {}]
  %s6 = inlined_call_operand.vmem [shape: f32[8,1], index: 6, kind: input, shape index: {}]
  %s7 = inlined_call_operand.vmem [shape: f32[8,1], index: 7, kind: input, shape index: {}]
  %s8 = inlined_call_operand.hbm [shape: f32[2,8,256], index: 8, kind: output, shape index: {}]
  %s9 = sld [smem:[#allocation0]]
  $region65: #{tpu_custom_call.1} parent=0
    _
  %s11 = ssub.s32 1, %s9
  %s12 = scalar_select 0, %s11, %s9
  $region1: #{tpu_custom_call.1} parent=0
    #allocation2 [shape = 'u8[16384]{0}', space=vmem, size = 0x4000, scoped, tag = 'output window, operand 0']
    #allocation3 [shape = 's32[2]{0}', space=sflag, size = 0x8, scoped, tag = 'scoped memory for tpu_custom_call.1']
    %13 = vsyncpa [#allocation3], 0
    %s14 = scalar_lea.sflag [#allocation3], 1
    %15 = vsyncpa %s14, 0
    loop: start=0, step=1, limit=4
    $region2: #{tpu_custom_call.1} parent=1 // loop_pre_header
      _
    $region3: #{tpu_custom_call.1} parent=1 // loop_header
      %s17 = sphi 0, %s21
      %p18 = scmp.ge.s32.totalorder %s17, 4
      %s27 = sphi 0, %s29
      %s30 = sphi 0, %s27
      %s31 = sphi 0, %s30
      %s47 = sphi 0, %s31
      %s51 = sphi 0, %s51
      %s53 = sphi 0, %s51
      %s54 = sphi 0, %s53
      %s68 = sphi 0, %s54
      %s72 = sphi 0, %s72
      %s74 = sphi 0, %s72
      %s75 = sphi 0, %s74
      %s89 = sphi 0, %s75
      %s93 = sphi 0, %s93
      %s95 = sphi 0, %s93
      %s96 = sphi 0, %s95
      %s110 = sphi 0, %s96
      %s114 = sphi 0, %s114
      %s116 = sphi 0, %s114
      %s117 = sphi 0, %s116
      %s131 = sphi 0, %s117
      %s135 = sphi 0, %s135
      %s137 = sphi 0, %s135
      %s138 = sphi 0, %s137
      %s152 = sphi 0, %s138
      %s156 = sphi 0, %s156
      %s158 = sphi 0, %s156
      %s159 = sphi 0, %s158
      %s173 = sphi 0, %s159
      %s177 = sphi 0, %s177
      %s179 = sphi 0, %s177
      %s180 = sphi 0, %s179
      %s194 = sphi 0, %s180
      %s200 = sphi 0, %s202
      %s203 = sphi 0, %s200
      %s204 = sphi 0, %s203
      %s220 = sphi 0, %s204
    $region4: #{tpu_custom_call.1} parent=1 // loop_header_branch
      %20 = sbr.rel (%p18) target = $region8
    $region5: #{tpu_custom_call.1} parent=1 // loop_body
      %s22 = ssub.s32 %s17, 1
      %s23 = ssub.s32 %s17, 2
      %s24 = sadd.s32 %s17, 1
      %s25 = ssub.s32 %s17, %s24
      %p26 = scmp.eq.s32.totalorder %s25, 0
      %s28 = sadd.s32 %s27, 1
      %s29 = scalar_select %p26, %s27, %s28
      %p32 = pneg %p26
      %p33 = scmp.eq.s32.totalorder %s17, 1
      %p34 = por %p32, %p33
      %p35 = scmp.ne.s32.totalorder %s27, %s30
      %p36 = scmp.eq.s32.totalorder %s17, 0
      %p37 = por %p35, %p36
      %p38 = scmp.ne.s32.totalorder %s27, %s30
      %p39 = scmp.eq.s32.totalorder %s22, 1
      %p40 = por %p38, %p39
      %p41 = scmp.ne.s32.totalorder %s30, %s31
      %p42 = scmp.eq.s32.totalorder %s22, 0
      %p43 = por %p41, %p42
      %p44 = scmp.ne.s32.totalorder %s30, %s31
      %p45 = scmp.eq.s32.totalorder %s23, 1
      %p46 = por %p44, %p45
      %p48 = scmp.ne.s32.totalorder %s31, %s47
      %p49 = scmp.eq.s32.totalorder %s23, 0
      %p50 = por %p48, %p49
      %s52 = sadd.s32 %s51, 1
      %p55 = scmp.eq.s32.totalorder %s17, 1
      %p56 = scmp.ne.s32.totalorder %s51, %s53
      %p57 = scmp.eq.s32.totalorder %s17, 0
      %p58 = por %p56, %p57
      %p59 = scmp.ne.s32.totalorder %s51, %s53
      %p60 = scmp.eq.s32.totalorder %s22, 1
      %p61 = por %p59, %p60
      %p62 = scmp.ne.s32.totalorder %s53, %s54
      %p63 = scmp.eq.s32.totalorder %s22, 0
      %p64 = por %p62, %p63
      %p65 = scmp.ne.s32.totalorder %s53, %s54
      %p66 = scmp.eq.s32.totalorder %s23, 1
      %p67 = por %p65, %p66
      %p69 = scmp.ne.s32.totalorder %s54, %s68
      %p70 = scmp.eq.s32.totalorder %s23, 0
      %p71 = por %p69, %p70
      %s73 = sadd.s32 %s72, 1
      %p76 = scmp.eq.s32.totalorder %s17, 1
      %p77 = scmp.ne.s32.totalorder %s72, %s74
      %p78 = scmp.eq.s32.totalorder %s17, 0
      %p79 = por %p77, %p78
      %p80 = scmp.ne.s32.totalorder %s72, %s74
      %p81 = scmp.eq.s32.totalorder %s22, 1
      %p82 = por %p80, %p81
      %p83 = scmp.ne.s32.totalorder %s74, %s75
      %p84 = scmp.eq.s32.totalorder %s22, 0
      %p85 = por %p83, %p84
      %p86 = scmp.ne.s32.totalorder %s74, %s75
      %p87 = scmp.eq.s32.totalorder %s23, 1
      %p88 = por %p86, %p87
      %p90 = scmp.ne.s32.totalorder %s75, %s89
      %p91 = scmp.eq.s32.totalorder %s23, 0
      %p92 = por %p90, %p91
      %s94 = sadd.s32 %s93, 1
      %p97 = scmp.eq.s32.totalorder %s17, 1
      %p98 = scmp.ne.s32.totalorder %s93, %s95
      %p99 = scmp.eq.s32.totalorder %s17, 0
      %p100 = por %p98, %p99
      %p101 = scmp.ne.s32.totalorder %s93, %s95
      %p102 = scmp.eq.s32.totalorder %s22, 1
      %p103 = por %p101, %p102
      %p104 = scmp.ne.s32.totalorder %s95, %s96
      %p105 = scmp.eq.s32.totalorder %s22, 0
      %p106 = por %p104, %p105
      %p107 = scmp.ne.s32.totalorder %s95, %s96
      %p108 = scmp.eq.s32.totalorder %s23, 1
      %p109 = por %p107, %p108
      %p111 = scmp.ne.s32.totalorder %s96, %s110
      %p112 = scmp.eq.s32.totalorder %s23, 0
      %p113 = por %p111, %p112
      %s115 = sadd.s32 %s114, 1
      %p118 = scmp.eq.s32.totalorder %s17, 1
      %p119 = scmp.ne.s32.totalorder %s114, %s116
      %p120 = scmp.eq.s32.totalorder %s17, 0
      %p121 = por %p119, %p120
      %p122 = scmp.ne.s32.totalorder %s114, %s116
      %p123 = scmp.eq.s32.totalorder %s22, 1
      %p124 = por %p122, %p123
      %p125 = scmp.ne.s32.totalorder %s116, %s117
      %p126 = scmp.eq.s32.totalorder %s22, 0
      %p127 = por %p125, %p126
      %p128 = scmp.ne.s32.totalorder %s116, %s117
      %p129 = scmp.eq.s32.totalorder %s23, 1
      %p130 = por %p128, %p129
      %p132 = scmp.ne.s32.totalorder %s117, %s131
      %p133 = scmp.eq.s32.totalorder %s23, 0
      %p134 = por %p132, %p133
      %s136 = sadd.s32 %s135, 1
      %p139 = scmp.eq.s32.totalorder %s17, 1
      %p140 = scmp.ne.s32.totalorder %s135, %s137
      %p141 = scmp.eq.s32.totalorder %s17, 0
      %p142 = por %p140, %p141
      %p143 = scmp.ne.s32.totalorder %s135, %s137
      %p144 = scmp.eq.s32.totalorder %s22, 1
      %p145 = por %p143, %p144
      %p146 = scmp.ne.s32.totalorder %s137, %s138
      %p147 = scmp.eq.s32.totalorder %s22, 0
      %p148 = por %p146, %p147
      %p149 = scmp.ne.s32.totalorder %s137, %s138
      %p150 = scmp.eq.s32.totalorder %s23, 1
      %p151 = por %p149, %p150
      %p153 = scmp.ne.s32.totalorder %s138, %s152
      %p154 = scmp.eq.s32.totalorder %s23, 0
      %p155 = por %p153, %p154
      %s157 = sadd.s32 %s156, 1
      %p160 = scmp.eq.s32.totalorder %s17, 1
      %p161 = scmp.ne.s32.totalorder %s156, %s158
      %p162 = scmp.eq.s32.totalorder %s17, 0
      %p163 = por %p161, %p162
      %p164 = scmp.ne.s32.totalorder %s156, %s158
      %p165 = scmp.eq.s32.totalorder %s22, 1
      %p166 = por %p164, %p165
      %p167 = scmp.ne.s32.totalorder %s158, %s159
      %p168 = scmp.eq.s32.totalorder %s22, 0
      %p169 = por %p167, %p168
      %p170 = scmp.ne.s32.totalorder %s158, %s159
      %p171 = scmp.eq.s32.totalorder %s23, 1
      %p172 = por %p170, %p171
      %p174 = scmp.ne.s32.totalorder %s159, %s173
      %p175 = scmp.eq.s32.totalorder %s23, 0
      %p176 = por %p174, %p175
      %s178 = sadd.s32 %s177, 1
      %p181 = scmp.eq.s32.totalorder %s17, 1
      %p182 = scmp.ne.s32.totalorder %s177, %s179
      %p183 = scmp.eq.s32.totalorder %s17, 0
      %p184 = por %p182, %p183
      %p185 = scmp.ne.s32.totalorder %s177, %s179
      %p186 = scmp.eq.s32.totalorder %s22, 1
      %p187 = por %p185, %p186
      %p188 = scmp.ne.s32.totalorder %s179, %s180
      %p189 = scmp.eq.s32.totalorder %s22, 0
      %p190 = por %p188, %p189
      %p191 = scmp.ne.s32.totalorder %s179, %s180
      %p192 = scmp.eq.s32.totalorder %s23, 1
      %p193 = por %p191, %p192
      %p195 = scmp.ne.s32.totalorder %s180, %s194
      %p196 = scmp.eq.s32.totalorder %s23, 0
      %p197 = por %p195, %p196
      %s198 = ssub.s32 %s17, %s24
      %p199 = scmp.eq.s32.totalorder %s198, 0
      %s201 = sadd.s32 %s200, 1
      %s202 = scalar_select %p199, %s200, %s201
      %p205 = pneg %p199
      %p206 = scmp.eq.s32.totalorder %s17, 1
      %p207 = por %p205, %p206
      %p208 = scmp.ne.s32.totalorder %s200, %s203
      %p209 = scmp.eq.s32.totalorder %s17, 0
      %p210 = por %p208, %p209
      %p211 = scmp.ne.s32.totalorder %s200, %s203
      %p212 = scmp.eq.s32.totalorder %s22, 1
      %p213 = por %p211, %p212
      %p214 = scmp.ne.s32.totalorder %s203, %s204
      %p215 = scmp.eq.s32.totalorder %s22, 0
      %p216 = por %p214, %p215
      %p217 = scmp.ne.s32.totalorder %s203, %s204
      %p218 = scmp.eq.s32.totalorder %s23, 1
      %p219 = por %p217, %p218
      %p221 = scmp.ne.s32.totalorder %s204, %s220
      %p222 = scmp.eq.s32.totalorder %s23, 0
      %p223 = por %p221, %p222
      %p224 = scmp.le.s32.totalorder 1, %s17
      %p225 = scmp.lt.s32.totalorder %s17, 3
      %p226 = pnand %p224, %p225
      %p227 = pneg %p226
      // Predicated region
      $region9: #{tpu_custom_call.1} parent=5 // pred_check
        _
      $region10: #{tpu_custom_call.1} parent=5 // pred_check_branch
        %229 = sbr.rel (%p226) target = $region12
      $region11: #{tpu_custom_call.1} parent=5 // pred_region
        %s230 = ssub.s32 %s17, 1
        // Predicated region
        $region13: #{tpu_custom_call.1} parent=11 // pred_check
          %p231 = pneg %p64
        $region14: #{tpu_custom_call.1} parent=11 // pred_check_branch
          %233 = sbr.rel (%p231) target = $region16
        $region15: #{tpu_custom_call.1} parent=11 // pred_region
          _
        $region16: #{tpu_custom_call.1} parent=11 // pred_fallthru
          _
        // Predicated region
        $region17: #{tpu_custom_call.1} parent=11 // pred_check
          %p234 = pneg %p85
        $region18: #{tpu_custom_call.1} parent=11 // pred_check_branch
          %236 = sbr.rel (%p234) target = $region20
        $region19: #{tpu_custom_call.1} parent=11 // pred_region
          _
        $region20: #{tpu_custom_call.1} parent=11 // pred_fallthru
          _
        // Predicated region
        $region21: #{tpu_custom_call.1} parent=11 // pred_check
          %p237 = pneg %p106
        $region22: #{tpu_custom_call.1} parent=11 // pred_check_branch
          %239 = sbr.rel (%p237) target = $region24
        $region23: #{tpu_custom_call.1} parent=11 // pred_region
          _
        $region24: #{tpu_custom_call.1} parent=11 // pred_fallthru
          _
        // Predicated region
        $region25: #{tpu_custom_call.1} parent=11 // pred_check
          %p240 = pneg %p127
        $region26: #{tpu_custom_call.1} parent=11 // pred_check_branch
          %242 = sbr.rel (%p240) target = $region28
        $region27: #{tpu_custom_call.1} parent=11 // pred_region
          _
        $region28: #{tpu_custom_call.1} parent=11 // pred_fallthru
          _
        // Predicated region
        $region29: #{tpu_custom_call.1} parent=11 // pred_check
          %p243 = pneg %p148
        $region30: #{tpu_custom_call.1} parent=11 // pred_check_branch
          %245 = sbr.rel (%p243) target = $region32
        $region31: #{tpu_custom_call.1} parent=11 // pred_region
          _
        $region32: #{tpu_custom_call.1} parent=11 // pred_fallthru
          _
        // Predicated region
        $region33: #{tpu_custom_call.1} parent=11 // pred_check
          %p246 = pneg %p169
        $region34: #{tpu_custom_call.1} parent=11 // pred_check_branch
          %248 = sbr.rel (%p246) target = $region36
        $region35: #{tpu_custom_call.1} parent=11 // pred_region
          _
        $region36: #{tpu_custom_call.1} parent=11 // pred_fallthru
          _
        // Predicated region
        $region37: #{tpu_custom_call.1} parent=11 // pred_check
          %p249 = pneg %p190
        $region38: #{tpu_custom_call.1} parent=11 // pred_check_branch
          %251 = sbr.rel (%p249) target = $region40
        $region39: #{tpu_custom_call.1} parent=11 // pred_region
          _
        $region40: #{tpu_custom_call.1} parent=11 // pred_fallthru
          _
      $region12: #{tpu_custom_call.1} parent=5 // pred_fallthru
        _
      %p252 = scmp.lt.s32.totalorder %s17, 2
      // Predicated region
      $region41: #{tpu_custom_call.1} parent=5 // pred_check
        %p253 = pneg %p252
      $region42: #{tpu_custom_call.1} parent=5 // pred_check_branch
        %255 = sbr.rel (%p253) target = $region44
      $region43: #{tpu_custom_call.1} parent=5 // pred_region
        // Predicated region
        $region45: #{tpu_custom_call.1} parent=43 // pred_check
          %p256 = pneg %p37
        $region46: #{tpu_custom_call.1} parent=43 // pred_check_branch
          %258 = sbr.rel (%p256) target = $region48
        $region47: #{tpu_custom_call.1} parent=43 // pred_region
          %p259 = scmp.lt.s32.totalorder %s17, 1
          %s260 = scalar_select %p259, %s17, 1
          %s261 = smul.addr %s260, 2
          %s262 = smul.addr %s261, 4
          %s263 = scalar_lea.vmem %s0, %s262
        $region48: #{tpu_custom_call.1} parent=43 // pred_fallthru
          _
      $region44: #{tpu_custom_call.1} parent=5 // pred_fallthru
        _
      %p264 = scmp.le.s32.totalorder 1, %s17
      %p265 = scmp.lt.s32.totalorder %s17, 3
      %p266 = pnand %p264, %p265
      %p267 = pneg %p266
      // Predicated region
      $region49: #{tpu_custom_call.1} parent=5 // pred_check
        _
      $region50: #{tpu_custom_call.1} parent=5 // pred_check_branch
        %269 = sbr.rel (%p266) target = $region52
      $region51: #{tpu_custom_call.1} parent=5 // pred_region
        %s270 = ssub.s32 %s17, 1
        %p271 = scmp.lt.s32.totalorder %s22, 1
        %s272 = scalar_select %p271, %s22, 1
        %s273 = smul.addr %s272, 2
        %s274 = smul.addr %s273, 4
        %s275 = scalar_lea.vmem %s0, %s274
        %p276 = pneg %p43
        %p277 = pneg %p40
        %p278 = pneg %p64
        %p279 = pneg %p61
        %p280 = pneg %p85
        %p281 = pneg %p82
        %p282 = pneg %p106
        %p283 = pneg %p103
        %p284 = pneg %p127
        %p285 = pneg %p124
        %p286 = pneg %p148
        %p287 = pneg %p145
        %p288 = pneg %p169
        %p289 = pneg %p166
        %p290 = pneg %p190
        %p291 = pneg %p187
        %p292 = pneg %p216
        %p293 = pneg %p213
        %s294 = sand.u32 %s203, 1
        %s295 = scalar_lea.sflag [#allocation3], %s294
        %s296 = sand.u32 %s203, 1
        %s297 = smul.addr %s296, 16
        %s298 = scalar_lea.vmem [#allocation2], %s297
        %p299 = scmp.lt.s32.totalorder %s22, 1
        %s300 = scalar_select %p299, %s22, 1
        %s301 = smul.addr %s300, 2
        %s302 = smul.addr %s301, 4
        %s303 = scalar_lea.vmem %s0, %s302
        %v305 = vld [vmem:[%s303] sm:$0xff]
        %v306 = vld [vmem:[%s2] sm:$0xff]
        %v307 = vld [vmem:[%s2 + $0x8] sm:$0xff]
        %v308 = vld [vmem:[%s2 + $0x10] sm:$0x1]
        %v309 = vld [vmem:[%s2 + $0x18] sm:$0x1]
        %v311 = vcombine.high %v305, %v305
        %313 = vrot.lane.b32.xlu0 %v305, 17
        %v314 = vpop.permute.xlu0 %313
        %315 = vrot.lane.b32.xlu0 %v311, 17
        %v316 = vpop.permute.xlu0 %315
        %v317 = vlaneseq
        %v318 = vand.u32 %v317, 127
        %vm319 = vcmp.lt.s32.totalorder %v318, 17
        %v320 = vsel %vm319, %v314, %v316
        %v321 = vsel %vm319, %v316, %v314
        %v322 = vlaneseq
        %v323 = vshrl.u32 %v322, 7
        %v324 = vsub.s32 0, %v323
        %v325 = vrot.slane %v306, %v324
        %v326 = vlaneseq
        %v327 = vshrl.u32 %v326, 7
        %v328 = vsub.s32 0, %v327
        %v329 = vrot.slane %v307, %v328
        %v330 = vmul.f32 %v321, %v325
        %v331 = vmul.f32 %v320, %v329
        %v332 = vpack.c.bf16 %v330, %v330
        %v333 = vpack.c.bf16 %v331, %v331
        %v334 = vld [vmem:[%s1] sm:$0xf]
        %335 = vrot.lane.b32.xlu0 %v305, 16
        %v336 = vpop.permute.xlu0 %335
        %337 = vrot.lane.b32.xlu0 %v311, 16
        %v338 = vpop.permute.xlu0 %337
        %vm339 = vcmp.lt.s32.totalorder %v318, 16
        %v340 = vsel %vm339, %v336, %v338
        %v341 = vsel %vm339, %v338, %v336
        %v342 = vlaneseq
        %v343 = vshrl.u32 %v342, 7
        %v344 = vsub.s32 1, %v343
        %v345 = vrot.slane %v306, %v344
        %v346 = vlaneseq
        %v347 = vshrl.u32 %v346, 7
        %v348 = vsub.s32 1, %v347
        %v349 = vrot.slane %v307, %v348
        %v350 = vmul.f32 %v341, %v345
        %v351 = vmul.f32 %v340, %v349
        %v352 = vpack.c.bf16 %v350, %v350
        %v353 = vpack.c.bf16 %v351, %v351
        %s354 = scalar_lea.vmem %s1, 4
        %v355 = vld [vmem:[%s354] sm:$0xf]
        %vm356 = vcmask 31744
        %v358 = vsel %vm356, %v355, 0
        %vm360 = vcmask 1041408
        %v362 = vsel %vm360, %v352, 0
        %v365 = vsel %vm360, %v353, 0
        %367 = vmatprep.subr.bf16.mxu0 %v365
        %368 = vmatpush1.bf16.msra.mxu0 %v362
        %369 = vmatprep.subr.bf16.mxu0 0
        %370 = vmatpush1.bf16.msra.mxu0 0
        %371 = vmatprep.subr.bf16.mxu0 0
        %372 = vmatpush1.bf16.msra.mxu0 0
        %373 = vmatprep.subr.bf16.mxu0 0
        %374 = vmatpush1.bf16.msra.mxu0 0
        %375 = vmatprep.subr.bf16.mxu0 0
        %376 = vmatpush1.bf16.msra.mxu0 0
        %377 = vmatprep.subr.bf16.mxu0 0
        %378 = vmatpush1.bf16.msra.mxu0 0
        %379 = vmatprep.subr.bf16.mxu0 0
        %380 = vmatpush1.bf16.msra.mxu0 0
        %381 = vmatprep.subr.bf16.mxu0 0
        %382 = vmatpush1.bf16.msra.mxu0 0
        %383 = vmatprep.subr.bf16.mxu0 0
        %384 = vmatpush1.bf16.msra.mxu0 0
        %385 = vmatprep.subr.bf16.mxu0 0
        %386 = vmatpush1.bf16.msra.mxu0 0
        %387 = vmatprep.subr.bf16.mxu0 0
        %388 = vmatpush1.bf16.msra.mxu0 0
        %389 = vmatprep.subr.bf16.mxu0 0
        %390 = vmatpush1.bf16.msra.mxu0 0
        %391 = vmatprep.subr.bf16.mxu0 0
        %392 = vmatpush1.bf16.msra.mxu0 0
        %393 = vmatprep.subr.bf16.mxu0 0
        %394 = vmatpush1.bf16.msra.mxu0 0
        %395 = vmatprep.subr.bf16.mxu0 0
        %396 = vmatpush1.bf16.msra.mxu0 0
        %397 = vmatprep.subr.bf16.mxu0 0
        %398 = vmatpush1.bf16.msra.mxu0 0
        %399 = vmatprep.mubr.bf16.mxu0 0
        %400 = vmatmul.mubr.bf16.gmra.mrb[0].mxu0 %v358
        %v401 = vpop.f32.mrb[0].mxu0
        %v402 = vadd.f32 0.0, %v401
        %v403 = vpop.f32.mrb[0].mxu0
        %v404 = vadd.f32 0.0, %v403
        %v405 = vpop.f32.mrb[0].mxu0
        %v406 = vpop.f32.mrb[0].mxu0
        %407 = vdwg.mxu0
        %v409 = vsel %vm356, %v334, 0
        %v412 = vsel %vm360, %v332, 0
        %v415 = vsel %vm360, %v333, 0
        %417 = vmatprep.subr.bf16.mxu0 %v415
        %418 = vmatpush1.bf16.msra.mxu0 %v412
        %419 = vmatprep.subr.bf16.mxu0 0
        %420 = vmatpush1.bf16.msra.mxu0 0
        %421 = vmatprep.subr.bf16.mxu0 0
        %422 = vmatpush1.bf16.msra.mxu0 0
        %423 = vmatprep.subr.bf16.mxu0 0
        %424 = vmatpush1.bf16.msra.mxu0 0
        %425 = vmatprep.subr.bf16.mxu0 0
        %426 = vmatpush1.bf16.msra.mxu0 0
        %427 = vmatprep.subr.bf16.mxu0 0
        %428 = vmatpush1.bf16.msra.mxu0 0
        %429 = vmatprep.subr.bf16.mxu0 0
        %430 = vmatpush1.bf16.msra.mxu0 0
        %431 = vmatprep.subr.bf16.mxu0 0
        %432 = vmatpush1.bf16.msra.mxu0 0
        %433 = vmatprep.subr.bf16.mxu0 0
        %434 = vmatpush1.bf16.msra.mxu0 0
        %435 = vmatprep.subr.bf16.mxu0 0
        %436 = vmatpush1.bf16.msra.mxu0 0
        %437 = vmatprep.subr.bf16.mxu0 0
        %438 = vmatpush1.bf16.msra.mxu0 0
        %439 = vmatprep.subr.bf16.mxu0 0
        %440 = vmatpush1.bf16.msra.mxu0 0
        %441 = vmatprep.subr.bf16.mxu0 0
        %442 = vmatpush1.bf16.msra.mxu0 0
        %443 = vmatprep.subr.bf16.mxu0 0
        %444 = vmatpush1.bf16.msra.mxu0 0
        %445 = vmatprep.subr.bf16.mxu0 0
        %446 = vmatpush1.bf16.msra.mxu0 0
        %447 = vmatprep.subr.bf16.mxu0 0
        %448 = vmatpush1.bf16.msra.mxu0 0
        %449 = vmatprep.mubr.bf16.mxu0 0
        %450 = vmatmul.mubr.bf16.gmra.mrb[0].mxu0 %v409
        %v451 = vpop.f32.mrb[0].mxu0
        %v452 = vadd.f32 %v402, %v451
        %v453 = vpop.f32.mrb[0].mxu0
        %v454 = vadd.f32 %v404, %v453
        %v455 = vpop.f32.mrb[0].mxu0
        %v456 = vpop.f32.mrb[0].mxu0
        %457 = vdwg.mxu0
        %458 = vrot.lane.b32.xlu0 %v305, 15
        %v459 = vpop.permute.xlu0 %458
        %460 = vrot.lane.b32.xlu0 %v311, 15
        %v461 = vpop.permute.xlu0 %460
        %vm462 = vcmp.lt.s32.totalorder %v318, 15
        %v463 = vsel %vm462, %v459, %v461
        %v464 = vsel %vm462, %v461, %v459
        %v465 = vlaneseq
        %v466 = vshrl.u32 %v465, 7
        %v467 = vsub.s32 2, %v466
        %v468 = vrot.slane %v306, %v467
        %v469 = vlaneseq
        %v470 = vshrl.u32 %v469, 7
        %v471 = vsub.s32 2, %v470
        %v472 = vrot.slane %v307, %v471
        %v473 = vmul.f32 %v464, %v468
        %v474 = vmul.f32 %v463, %v472
        %v475 = vpack.c.bf16 %v473, %v473
        %v476 = vpack.c.bf16 %v474, %v474
        %s477 = scalar_lea.vmem %s1, 8
        %v478 = vld [vmem:[%s477] sm:$0xf]
        %v480 = vsel %vm356, %v478, 0
        %v483 = vsel %vm360, %v475, 0
        %v486 = vsel %vm360, %v476, 0
        %488 = vmatprep.subr.bf16.mxu0 %v486
        %489 = vmatpush1.bf16.msra.mxu0 %v483
        %490 = vmatprep.subr.bf16.mxu0 0
        %491 = vmatpush1.bf16.msra.mxu0 0
        %492 = vmatprep.subr.bf16.mxu0 0
        %493 = vmatpush1.bf16.msra.mxu0 0
        %494 = vmatprep.subr.bf16.mxu0 0
        %495 = vmatpush1.bf16.msra.mxu0 0
        %496 = vmatprep.subr.bf16.mxu0 0
        %497 = vmatpush1.bf16.msra.mxu0 0
        %498 = vmatprep.subr.bf16.mxu0 0
        %499 = vmatpush1.bf16.msra.mxu0 0
        %500 = vmatprep.subr.bf16.mxu0 0
        %501 = vmatpush1.bf16.msra.mxu0 0
        %502 = vmatprep.subr.bf16.mxu0 0
        %503 = vmatpush1.bf16.msra.mxu0 0
        %504 = vmatprep.subr.bf16.mxu0 0
        %505 = vmatpush1.bf16.msra.mxu0 0
        %506 = vmatprep.subr.bf16.mxu0 0
        %507 = vmatpush1.bf16.msra.mxu0 0
        %508 = vmatprep.subr.bf16.mxu0 0
        %509 = vmatpush1.bf16.msra.mxu0 0
        %510 = vmatprep.subr.bf16.mxu0 0
        %511 = vmatpush1.bf16.msra.mxu0 0
        %512 = vmatprep.subr.bf16.mxu0 0
        %513 = vmatpush1.bf16.msra.mxu0 0
        %514 = vmatprep.subr.bf16.mxu0 0
        %515 = vmatpush1.bf16.msra.mxu0 0
        %516 = vmatprep.subr.bf16.mxu0 0
        %517 = vmatpush1.bf16.msra.mxu0 0
        %518 = vmatprep.subr.bf16.mxu0 0
        %519 = vmatpush1.bf16.msra.mxu0 0
        %520 = vmatprep.mubr.bf16.mxu0 0
        %521 = vmatmul.mubr.bf16.gmra.mrb[0].mxu0 %v480
        %v522 = vpop.f32.mrb[0].mxu0
        %v523 = vadd.f32 0.0, %v522
        %v524 = vpop.f32.mrb[0].mxu0
        %v525 = vadd.f32 0.0, %v524
        %v526 = vpop.f32.mrb[0].mxu0
        %v527 = vpop.f32.mrb[0].mxu0
        %528 = vdwg.mxu0
        %v529 = vadd.f32 %v452, %v523
        %v530 = vadd.f32 %v454, %v525
        %531 = vrot.lane.b32.xlu0 %v305, 1
        %v532 = vpop.permute.xlu0 %531
        %533 = vrot.lane.b32.xlu0 %v311, 1
        %v534 = vpop.permute.xlu0 %533
        %vm535 = vcmp.lt.s32.totalorder %v318, 1
        %v536 = vsel %vm535, %v532, %v534
        %v537 = vsel %vm535, %v534, %v532
        %v538 = vlaneseq
        %v539 = vshrl.u32 %v538, 7
        %v540 = vsub.s32 3, %v539
        %v541 = vrot.slane %v306, %v540
        %v542 = vlaneseq
        %v543 = vshrl.u32 %v542, 7
        %v544 = vsub.s32 3, %v543
        %v545 = vrot.slane %v307, %v544
        %v546 = vmul.f32 %v537, %v541
        %v547 = vmul.f32 %v536, %v545
        %v548 = vpack.c.bf16 %v546, %v546
        %v549 = vpack.c.bf16 %v547, %v547
        %s550 = scalar_lea.vmem %s1, 12
        %v551 = vld [vmem:[%s550] sm:$0xf]
        %v553 = vsel %vm356, %v551, 0
        %v556 = vsel %vm360, %v548, 0
        %v559 = vsel %vm360, %v549, 0
        %561 = vmatprep.subr.bf16.mxu0 %v559
        %562 = vmatpush1.bf16.msra.mxu0 %v556
        %563 = vmatprep.subr.bf16.mxu0 0
        %564 = vmatpush1.bf16.msra.mxu0 0
        %565 = vmatprep.subr.bf16.mxu0 0
        %566 = vmatpush1.bf16.msra.mxu0 0
        %567 = vmatprep.subr.bf16.mxu0 0
        %568 = vmatpush1.bf16.msra.mxu0 0
        %569 = vmatprep.subr.bf16.mxu0 0
        %570 = vmatpush1.bf16.msra.mxu0 0
        %571 = vmatprep.subr.bf16.mxu0 0
        %572 = vmatpush1.bf16.msra.mxu0 0
        %573 = vmatprep.subr.bf16.mxu0 0
        %574 = vmatpush1.bf16.msra.mxu0 0
        %575 = vmatprep.subr.bf16.mxu0 0
        %576 = vmatpush1.bf16.msra.mxu0 0
        %577 = vmatprep.subr.bf16.mxu0 0
        %578 = vmatpush1.bf16.msra.mxu0 0
        %579 = vmatprep.subr.bf16.mxu0 0
        %580 = vmatpush1.bf16.msra.mxu0 0
        %581 = vmatprep.subr.bf16.mxu0 0
        %582 = vmatpush1.bf16.msra.mxu0 0
        %583 = vmatprep.subr.bf16.mxu0 0
        %584 = vmatpush1.bf16.msra.mxu0 0
        %585 = vmatprep.subr.bf16.mxu0 0
        %586 = vmatpush1.bf16.msra.mxu0 0
        %587 = vmatprep.subr.bf16.mxu0 0
        %588 = vmatpush1.bf16.msra.mxu0 0
        %589 = vmatprep.subr.bf16.mxu0 0
        %590 = vmatpush1.bf16.msra.mxu0 0
        %591 = vmatprep.subr.bf16.mxu0 0
        %592 = vmatpush1.bf16.msra.mxu0 0
        %593 = vmatprep.mubr.bf16.mxu0 0
        %594 = vmatmul.mubr.bf16.gmra.mrb[0].mxu0 %v553
        %v595 = vpop.f32.mrb[0].mxu0
        %v596 = vadd.f32 0.0, %v595
        %v597 = vpop.f32.mrb[0].mxu0
        %v598 = vadd.f32 0.0, %v597
        %v599 = vpop.f32.mrb[0].mxu0
        %v600 = vpop.f32.mrb[0].mxu0
        %601 = vdwg.mxu0
        %v602 = vadd.f32 %v529, %v596
        %v603 = vadd.f32 %v530, %v598
        %v604 = vlaneseq
        %v605 = vshrl.u32 %v604, 7
        %v606 = vsub.s32 4, %v605
        %v607 = vrot.slane %v306, %v606
        %v608 = vlaneseq
        %v609 = vshrl.u32 %v608, 7
        %v610 = vsub.s32 4, %v609
        %v611 = vrot.slane %v307, %v610
        %v614 = vcombine.low %v607, %v611
        %v616 = vmul.f32 %v305, %v614
        %v618 = vcombine.high %v616, %v616
        %v620 = vpack.c.bf16 %v616, %v616
        %v621 = vpack.c.bf16 %v618, %v618
        %s622 = scalar_lea.vmem %s1, 16
        %v623 = vld [vmem:[%s622] sm:$0xf]
        %v625 = vsel %vm356, %v623, 0
        %v628 = vsel %vm360, %v620, 0
        %v631 = vsel %vm360, %v621, 0
        %633 = vmatprep.subr.bf16.mxu0 %v631
        %634 = vmatpush1.bf16.msra.mxu0 %v628
        %635 = vmatprep.subr.bf16.mxu0 0
        %636 = vmatpush1.bf16.msra.mxu0 0
        %637 = vmatprep.subr.bf16.mxu0 0
        %638 = vmatpush1.bf16.msra.mxu0 0
        %639 = vmatprep.subr.bf16.mxu0 0
        %640 = vmatpush1.bf16.msra.mxu0 0
        %641 = vmatprep.subr.bf16.mxu0 0
        %642 = vmatpush1.bf16.msra.mxu0 0
        %643 = vmatprep.subr.bf16.mxu0 0
        %644 = vmatpush1.bf16.msra.mxu0 0
        %645 = vmatprep.subr.bf16.mxu0 0
        %646 = vmatpush1.bf16.msra.mxu0 0
        %647 = vmatprep.subr.bf16.mxu0 0
        %648 = vmatpush1.bf16.msra.mxu0 0
        %649 = vmatprep.subr.bf16.mxu0 0
        %650 = vmatpush1.bf16.msra.mxu0 0
        %651 = vmatprep.subr.bf16.mxu0 0
        %652 = vmatpush1.bf16.msra.mxu0 0
        %653 = vmatprep.subr.bf16.mxu0 0
        %654 = vmatpush1.bf16.msra.mxu0 0
        %655 = vmatprep.subr.bf16.mxu0 0
        %656 = vmatpush1.bf16.msra.mxu0 0
        %657 = vmatprep.subr.bf16.mxu0 0
        %658 = vmatpush1.bf16.msra.mxu0 0
        %659 = vmatprep.subr.bf16.mxu0 0
        %660 = vmatpush1.bf16.msra.mxu0 0
        %661 = vmatprep.subr.bf16.mxu0 0
        %662 = vmatpush1.bf16.msra.mxu0 0
        %663 = vmatprep.subr.bf16.mxu0 0
        %664 = vmatpush1.bf16.msra.mxu0 0
        %665 = vmatprep.mubr.bf16.mxu0 0
        %666 = vmatmul.mubr.bf16.gmra.mrb[0].mxu0 %v625
        %v667 = vpop.f32.mrb[0].mxu0
        %v668 = vadd.f32 0.0, %v667
        %v669 = vpop.f32.mrb[0].mxu0
        %v670 = vadd.f32 0.0, %v669
        %v671 = vpop.f32.mrb[0].mxu0
        %v672 = vpop.f32.mrb[0].mxu0
        %673 = vdwg.mxu0
        %v674 = vadd.f32 %v602, %v668
        %v675 = vadd.f32 %v603, %v670
        %676 = vrot.lane.b32.xlu0 %v305, 127
        %v677 = vpop.permute.xlu0 %676
        %678 = vrot.lane.b32.xlu0 %v311, 127
        %v679 = vpop.permute.xlu0 %678
        %vm680 = vcmp.lt.s32.totalorder %v318, 127
        %v681 = vsel %vm680, %v677, %v679
        %v682 = vsel %vm680, %v679, %v677
        %v683 = vlaneseq
        %v684 = vshrl.u32 %v683, 7
        %v685 = vsub.s32 5, %v684
        %v686 = vrot.slane %v306, %v685
        %v687 = vlaneseq
        %v688 = vshrl.u32 %v687, 7
        %v689 = vsub.s32 5, %v688
        %v690 = vrot.slane %v307, %v689
        %v691 = vmul.f32 %v681, %v686
        %v692 = vmul.f32 %v682, %v690
        %v693 = vpack.c.bf16 %v691, %v691
        %v694 = vpack.c.bf16 %v692, %v692
        %s695 = scalar_lea.vmem %s1, 20
        %v696 = vld [vmem:[%s695] sm:$0xf]
        %v698 = vsel %vm356, %v696, 0
        %v701 = vsel %vm360, %v693, 0
        %v704 = vsel %vm360, %v694, 0
        %706 = vmatprep.subr.bf16.mxu0 %v704
        %707 = vmatpush1.bf16.msra.mxu0 %v701
        %708 = vmatprep.subr.bf16.mxu0 0
        %709 = vmatpush1.bf16.msra.mxu0 0
        %710 = vmatprep.subr.bf16.mxu0 0
        %711 = vmatpush1.bf16.msra.mxu0 0
        %712 = vmatprep.subr.bf16.mxu0 0
        %713 = vmatpush1.bf16.msra.mxu0 0
        %714 = vmatprep.subr.bf16.mxu0 0
        %715 = vmatpush1.bf16.msra.mxu0 0
        %716 = vmatprep.subr.bf16.mxu0 0
        %717 = vmatpush1.bf16.msra.mxu0 0
        %718 = vmatprep.subr.bf16.mxu0 0
        %719 = vmatpush1.bf16.msra.mxu0 0
        %720 = vmatprep.subr.bf16.mxu0 0
        %721 = vmatpush1.bf16.msra.mxu0 0
        %722 = vmatprep.subr.bf16.mxu0 0
        %723 = vmatpush1.bf16.msra.mxu0 0
        %724 = vmatprep.subr.bf16.mxu0 0
        %725 = vmatpush1.bf16.msra.mxu0 0
        %726 = vmatprep.subr.bf16.mxu0 0
        %727 = vmatpush1.bf16.msra.mxu0 0
        %728 = vmatprep.subr.bf16.mxu0 0
        %729 = vmatpush1.bf16.msra.mxu0 0
        %730 = vmatprep.subr.bf16.mxu0 0
        %731 = vmatpush1.bf16.msra.mxu0 0
        %732 = vmatprep.subr.bf16.mxu0 0
        %733 = vmatpush1.bf16.msra.mxu0 0
        %734 = vmatprep.subr.bf16.mxu0 0
        %735 = vmatpush1.bf16.msra.mxu0 0
        %736 = vmatprep.subr.bf16.mxu0 0
        %737 = vmatpush1.bf16.msra.mxu0 0
        %738 = vmatprep.mubr.bf16.mxu0 0
        %739 = vmatmul.mubr.bf16.gmra.mrb[0].mxu0 %v698
        %v740 = vpop.f32.mrb[0].mxu0
        %v741 = vadd.f32 0.0, %v740
        %v742 = vpop.f32.mrb[0].mxu0
        %v743 = vadd.f32 0.0, %v742
        %v744 = vpop.f32.mrb[0].mxu0
        %v745 = vpop.f32.mrb[0].mxu0
        %746 = vdwg.mxu0
        %v747 = vadd.f32 %v674, %v741
        %v748 = vadd.f32 %v675, %v743
        %749 = vrot.lane.b32.xlu0 %v305, 113
        %v750 = vpop.permute.xlu0 %749
        %751 = vrot.lane.b32.xlu0 %v311, 113
        %v752 = vpop.permute.xlu0 %751
        %vm753 = vcmp.lt.s32.totalorder %v318, 113
        %v754 = vsel %vm753, %v750, %v752
        %v755 = vsel %vm753, %v752, %v750
        %v756 = vlaneseq
        %v757 = vshrl.u32 %v756, 7
        %v758 = vsub.s32 6, %v757
        %v759 = vrot.slane %v306, %v758
        %v760 = vlaneseq
        %v761 = vshrl.u32 %v760, 7
        %v762 = vsub.s32 6, %v761
        %v763 = vrot.slane %v307, %v762
        %v764 = vmul.f32 %v754, %v759
        %v765 = vmul.f32 %v755, %v763
        %v766 = vpack.c.bf16 %v764, %v764
        %v767 = vpack.c.bf16 %v765, %v765
        %s768 = scalar_lea.vmem %s1, 24
        %v769 = vld [vmem:[%s768] sm:$0xf]
        %v771 = vsel %vm356, %v769, 0
        %v774 = vsel %vm360, %v766, 0
        %v777 = vsel %vm360, %v767, 0
        %779 = vmatprep.subr.bf16.mxu0 %v777
        %780 = vmatpush1.bf16.msra.mxu0 %v774
        %781 = vmatprep.subr.bf16.mxu0 0
        %782 = vmatpush1.bf16.msra.mxu0 0
        %783 = vmatprep.subr.bf16.mxu0 0
        %784 = vmatpush1.bf16.msra.mxu0 0
        %785 = vmatprep.subr.bf16.mxu0 0
        %786 = vmatpush1.bf16.msra.mxu0 0
        %787 = vmatprep.subr.bf16.mxu0 0
        %788 = vmatpush1.bf16.msra.mxu0 0
        %789 = vmatprep.subr.bf16.mxu0 0
        %790 = vmatpush1.bf16.msra.mxu0 0
        %791 = vmatprep.subr.bf16.mxu0 0
        %792 = vmatpush1.bf16.msra.mxu0 0
        %793 = vmatprep.subr.bf16.mxu0 0
        %794 = vmatpush1.bf16.msra.mxu0 0
        %795 = vmatprep.subr.bf16.mxu0 0
        %796 = vmatpush1.bf16.msra.mxu0 0
        %797 = vmatprep.subr.bf16.mxu0 0
        %798 = vmatpush1.bf16.msra.mxu0 0
        %799 = vmatprep.subr.bf16.mxu0 0
        %800 = vmatpush1.bf16.msra.mxu0 0
        %801 = vmatprep.subr.bf16.mxu0 0
        %802 = vmatpush1.bf16.msra.mxu0 0
        %803 = vmatprep.subr.bf16.mxu0 0
        %804 = vmatpush1.bf16.msra.mxu0 0
        %805 = vmatprep.subr.bf16.mxu0 0
        %806 = vmatpush1.bf16.msra.mxu0 0
        %807 = vmatprep.subr.bf16.mxu0 0
        %808 = vmatpush1.bf16.msra.mxu0 0
        %809 = vmatprep.subr.bf16.mxu0 0
        %810 = vmatpush1.bf16.msra.mxu0 0
        %811 = vmatprep.mubr.bf16.mxu0 0
        %812 = vmatmul.mubr.bf16.gmra.mrb[0].mxu0 %v771
        %v813 = vpop.f32.mrb[0].mxu0
        %v814 = vadd.f32 0.0, %v813
        %v815 = vpop.f32.mrb[0].mxu0
        %v816 = vadd.f32 0.0, %v815
        %v817 = vpop.f32.mrb[0].mxu0
        %v818 = vpop.f32.mrb[0].mxu0
        %819 = vdwg.mxu0
        %v820 = vadd.f32 %v747, %v814
        %v821 = vadd.f32 %v748, %v816
        %822 = vrot.lane.b32.xlu0 %v305, 112
        %v823 = vpop.permute.xlu0 %822
        %824 = vrot.lane.b32.xlu0 %v311, 112
        %v825 = vpop.permute.xlu0 %824
        %vm826 = vcmp.lt.s32.totalorder %v318, 112
        %v827 = vsel %vm826, %v823, %v825
        %v828 = vsel %vm826, %v825, %v823
        %v829 = vlaneseq
        %v830 = vshrl.u32 %v829, 7
        %v831 = vsub.s32 7, %v830
        %v832 = vrot.slane %v306, %v831
        %v833 = vlaneseq
        %v834 = vshrl.u32 %v833, 7
        %v835 = vsub.s32 7, %v834
        %v836 = vrot.slane %v307, %v835
        %v837 = vmul.f32 %v827, %v832
        %v838 = vmul.f32 %v828, %v836
        %v839 = vpack.c.bf16 %v837, %v837
        %v840 = vpack.c.bf16 %v838, %v838
        %s841 = scalar_lea.vmem %s1, 28
        %v842 = vld [vmem:[%s841] sm:$0xf]
        %v844 = vsel %vm356, %v842, 0
        %v847 = vsel %vm360, %v839, 0
        %v850 = vsel %vm360, %v840, 0
        %852 = vmatprep.subr.bf16.mxu0 %v850
        %853 = vmatpush1.bf16.msra.mxu0 %v847
        %854 = vmatprep.subr.bf16.mxu0 0
        %855 = vmatpush1.bf16.msra.mxu0 0
        %856 = vmatprep.subr.bf16.mxu0 0
        %857 = vmatpush1.bf16.msra.mxu0 0
        %858 = vmatprep.subr.bf16.mxu0 0
        %859 = vmatpush1.bf16.msra.mxu0 0
        %860 = vmatprep.subr.bf16.mxu0 0
        %861 = vmatpush1.bf16.msra.mxu0 0
        %862 = vmatprep.subr.bf16.mxu0 0
        %863 = vmatpush1.bf16.msra.mxu0 0
        %864 = vmatprep.subr.bf16.mxu0 0
        %865 = vmatpush1.bf16.msra.mxu0 0
        %866 = vmatprep.subr.bf16.mxu0 0
        %867 = vmatpush1.bf16.msra.mxu0 0
        %868 = vmatprep.subr.bf16.mxu0 0
        %869 = vmatpush1.bf16.msra.mxu0 0
        %870 = vmatprep.subr.bf16.mxu0 0
        %871 = vmatpush1.bf16.msra.mxu0 0
        %872 = vmatprep.subr.bf16.mxu0 0
        %873 = vmatpush1.bf16.msra.mxu0 0
        %874 = vmatprep.subr.bf16.mxu0 0
        %875 = vmatpush1.bf16.msra.mxu0 0
        %876 = vmatprep.subr.bf16.mxu0 0
        %877 = vmatpush1.bf16.msra.mxu0 0
        %878 = vmatprep.subr.bf16.mxu0 0
        %879 = vmatpush1.bf16.msra.mxu0 0
        %880 = vmatprep.subr.bf16.mxu0 0
        %881 = vmatpush1.bf16.msra.mxu0 0
        %882 = vmatprep.subr.bf16.mxu0 0
        %883 = vmatpush1.bf16.msra.mxu0 0
        %884 = vmatprep.mubr.bf16.mxu0 0
        %885 = vmatmul.mubr.bf16.gmra.mrb[0].mxu0 %v844
        %v886 = vpop.f32.mrb[0].mxu0
        %v887 = vadd.f32 0.0, %v886
        %v888 = vpop.f32.mrb[0].mxu0
        %v889 = vadd.f32 0.0, %v888
        %v890 = vpop.f32.mrb[0].mxu0
        %v891 = vpop.f32.mrb[0].mxu0
        %892 = vdwg.mxu0
        %v893 = vadd.f32 %v820, %v887
        %v894 = vadd.f32 %v821, %v889
        %895 = vrot.lane.b32.xlu0 %v305, 111
        %v896 = vpop.permute.xlu0 %895
        %897 = vrot.lane.b32.xlu0 %v311, 111
        %v898 = vpop.permute.xlu0 %897
        %vm899 = vcmp.lt.s32.totalorder %v318, 111
        %v900 = vsel %vm899, %v896, %v898
        %v901 = vsel %vm899, %v898, %v896
        %v902 = vlaneseq
        %v903 = vshrl.u32 %v902, 7
        %v904 = vsub.s32 0, %v903
        %v905 = vrot.slane %v308, %v904
        %v906 = vlaneseq
        %v907 = vshrl.u32 %v906, 7
        %v908 = vsub.s32 0, %v907
        %v909 = vrot.slane %v309, %v908
        %v910 = vmul.f32 %v900, %v905
        %v911 = vmul.f32 %v901, %v909
        %v912 = vpack.c.bf16 %v910, %v910
        %v913 = vpack.c.bf16 %v911, %v911
        %s914 = scalar_lea.vmem %s1, 32
        %v915 = vld [vmem:[%s914] sm:$0xf]
        %v917 = vsel %vm356, %v915, 0
        %v920 = vsel %vm360, %v912, 0
        %v923 = vsel %vm360, %v913, 0
        %925 = vmatprep.subr.bf16.mxu0 %v923
        %926 = vmatpush1.bf16.msra.mxu0 %v920
        %927 = vmatprep.subr.bf16.mxu0 0
        %928 = vmatpush1.bf16.msra.mxu0 0
        %929 = vmatprep.subr.bf16.mxu0 0
        %930 = vmatpush1.bf16.msra.mxu0 0
        %931 = vmatprep.subr.bf16.mxu0 0
        %932 = vmatpush1.bf16.msra.mxu0 0
        %933 = vmatprep.subr.bf16.mxu0 0
        %934 = vmatpush1.bf16.msra.mxu0 0
        %935 = vmatprep.subr.bf16.mxu0 0
        %936 = vmatpush1.bf16.msra.mxu0 0
        %937 = vmatprep.subr.bf16.mxu0 0
        %938 = vmatpush1.bf16.msra.mxu0 0
        %939 = vmatprep.subr.bf16.mxu0 0
        %940 = vmatpush1.bf16.msra.mxu0 0
        %941 = vmatprep.subr.bf16.mxu0 0
        %942 = vmatpush1.bf16.msra.mxu0 0
        %943 = vmatprep.subr.bf16.mxu0 0
        %944 = vmatpush1.bf16.msra.mxu0 0
        %945 = vmatprep.subr.bf16.mxu0 0
        %946 = vmatpush1.bf16.msra.mxu0 0
        %947 = vmatprep.subr.bf16.mxu0 0
        %948 = vmatpush1.bf16.msra.mxu0 0
        %949 = vmatprep.subr.bf16.mxu0 0
        %950 = vmatpush1.bf16.msra.mxu0 0
        %951 = vmatprep.subr.bf16.mxu0 0
        %952 = vmatpush1.bf16.msra.mxu0 0
        %953 = vmatprep.subr.bf16.mxu0 0
        %954 = vmatpush1.bf16.msra.mxu0 0
        %955 = vmatprep.subr.bf16.mxu0 0
        %956 = vmatpush1.bf16.msra.mxu0 0
        %957 = vmatprep.mubr.bf16.mxu0 0
        %958 = vmatmul.mubr.bf16.gmra.mrb[0].mxu0 %v917
        %v959 = vpop.f32.mrb[0].mxu0
        %v960 = vadd.f32 0.0, %v959
        %v961 = vpop.f32.mrb[0].mxu0
        %v962 = vadd.f32 0.0, %v961
        %v963 = vpop.f32.mrb[0].mxu0
        %v964 = vpop.f32.mrb[0].mxu0
        %965 = vdwg.mxu0
        %v966 = vadd.f32 %v893, %v960
        %v967 = vadd.f32 %v894, %v962
        %v968 = vld [vmem:[%s3] sm:$0xff]
        %970 = vset.pattern.permute.xlu0 0
        %971 = vperm.xlu0 %970, %v968
        %v972 = vpop.permute.xlu0 %971
        %v974 = vmul.f32 %v966, %v972
        %v975 = vmul.f32 %v967, %v972
        %v976 = vld [vmem:[%s4] sm:$0xff]
        %978 = vset.pattern.permute.xlu0 0
        %979 = vperm.xlu0 %978, %v976
        %v980 = vpop.permute.xlu0 %979
        %v982 = vadd.f32 %v974, %v980
        %v983 = vadd.f32 %v975, %v980
        %v984 = vmax.f32 %v982, 0.0
        %v985 = vmax.f32 %v983, 0.0
        %v986 = vld [vmem:[%s5] sm:$0xff]
        %vm987 = vcmask 64512
        %v989 = vsel %vm987, %v986, 0
        %991 = vmatprep.subr.mxu0 %v985
        %992 = vmatpush1.msra.mxu0 %v984
        %993 = vmatprep.subr.mxu0 0.0
        %994 = vmatpush1.msra.mxu0 0.0
        %995 = vmatprep.subr.mxu0 0.0
        %996 = vmatpush1.msra.mxu0 0.0
        %997 = vmatprep.subr.mxu0 0.0
        %998 = vmatpush1.msra.mxu0 0.0
        %999 = vmatprep.subr.mxu0 0.0
        %1000 = vmatpush1.msra.mxu0 0.0
        %1001 = vmatprep.subr.mxu0 0.0
        %1002 = vmatpush1.msra.mxu0 0.0
        %1003 = vmatprep.subr.mxu0 0.0
        %1004 = vmatpush1.msra.mxu0 0.0
        %1005 = vmatprep.subr.mxu0 0.0
        %1006 = vmatpush1.msra.mxu0 0.0
        %1007 = vmatprep.subr.mxu0 0.0
        %1008 = vmatpush1.msra.mxu0 0.0
        %1009 = vmatprep.subr.mxu0 0.0
        %1010 = vmatpush1.msra.mxu0 0.0
        %1011 = vmatprep.subr.mxu0 0.0
        %1012 = vmatpush1.msra.mxu0 0.0
        %1013 = vmatprep.subr.mxu0 0.0
        %1014 = vmatpush1.msra.mxu0 0.0
        %1015 = vmatprep.subr.mxu0 0.0
        %1016 = vmatpush1.msra.mxu0 0.0
        %1017 = vmatprep.subr.mxu0 0.0
        %1018 = vmatpush1.msra.mxu0 0.0
        %1019 = vmatprep.subr.mxu0 0.0
        %1020 = vmatpush1.msra.mxu0 0.0
        %1021 = vmatprep.subr.mxu0 0.0
        %1022 = vmatpush1.msra.mxu0 0.0
        %1023 = vmatprep.subr.mxu0 0.0
        %1024 = vmatpush1.msra.mxu0 0.0
        %1025 = vmatprep.subr.mxu0 0.0
        %1026 = vmatpush1.msra.mxu0 0.0
        %1027 = vmatprep.subr.mxu0 0.0
        %1028 = vmatpush1.msra.mxu0 0.0
        %1029 = vmatprep.subr.mxu0 0.0
        %1030 = vmatpush1.msra.mxu0 0.0
        %1031 = vmatprep.subr.mxu0 0.0
        %1032 = vmatpush1.msra.mxu0 0.0
        %1033 = vmatprep.subr.mxu0 0.0
        %1034 = vmatpush1.msra.mxu0 0.0
        %1035 = vmatprep.subr.mxu0 0.0
        %1036 = vmatpush1.msra.mxu0 0.0
        %1037 = vmatprep.subr.mxu0 0.0
        %1038 = vmatpush1.msra.mxu0 0.0
        %1039 = vmatprep.subr.mxu0 0.0
        %1040 = vmatpush1.msra.mxu0 0.0
        %1041 = vmatprep.subr.mxu0 0.0
        %1042 = vmatpush1.msra.mxu0 0.0
        %1043 = vmatprep.subr.mxu0 0.0
        %1044 = vmatpush1.msra.mxu0 0.0
        %1045 = vmatprep.subr.mxu0 0.0
        %1046 = vmatpush1.msra.mxu0 0.0
        %1047 = vmatprep.subr.mxu0 0.0
        %1048 = vmatpush1.msra.mxu0 0.0
        %1049 = vmatprep.subr.mxu0 0.0
        %1050 = vmatpush1.msra.mxu0 0.0
        %1051 = vmatprep.subr.mxu0 0.0
        %1052 = vmatpush1.msra.mxu0 0.0
        %1053 = vmatprep.subr.mxu0 0.0
        %1054 = vmatpush1.msra.mxu0 0.0
        %1055 = vmatprep.mubr.f32.mxu0 0.0
        %1056 = vmatmul.mubr.f32.gmra.mrb[0].mxu0 %v989
        %v1057 = vpop.f32.mrb[0].mxu0
        %v1058 = vadd.f32 0.0, %v1057
        %v1059 = vpop.f32.mrb[0].mxu0
        %v1060 = vadd.f32 0.0, %v1059
        %1061 = vdwg.mxu0
        %v1062 = vadd.f32 %v1058, %v1060
        %1063 = vadd.xlane.f32.xlu0 %v1062
        %v1064 = vpop.xlane.xlu0 %1063
        %v1065 = vmul.f32 %v1064, 0.00390625
        %v1066 = vld [vmem:[%s6] sm:$0xff]
        %v1067 = vmul.f32 %v1065, %v1066
        %v1068 = vld [vmem:[%s7] sm:$0xff]
        %v1069 = vadd.f32 %v1067, %v1068
        %v1070 = vxor.u32 %v1069, 2147483648
        %v1071 = vmul.f32 %v1070, 1.442695
        %v1072 = vpow.pop %v1071
        %v1073 = vadd.f32 %v1072, 1.0
        %v1074 = vrcp.pop %v1073
        %v1075 = vmul.f32 1.0, %v1074
        %1077 = vset.pattern.permute.xlu0 0
        %1078 = vperm.xlu0 %1077, %v1075
        %v1079 = vpop.permute.xlu0 %1078
        %v1081 = vmul.f32 %v984, %v1079
        %v1082 = vmul.f32 %v985, %v1079
        %1083 = vst [vmem:[%s298] sm:$0xff] %v1081
        %1084 = vst [vmem:[%s298 + $0x8] sm:$0xff] %v1082
        %s1085 = sand.u32 %s203, 1
        %s1086 = scalar_lea.sflag [#allocation3], %s1085
        %s1087 = sand.u32 %s203, 1
        %s1088 = smul.addr %s1087, 16
        %s1089 = scalar_lea.vmem [#allocation2], %s1088
        // Predicated region
        $region53: #{tpu_custom_call.1} parent=51 // pred_check
          %p1090 = pneg %p213
        $region54: #{tpu_custom_call.1} parent=51 // pred_check_branch
          %1092 = sbr.rel (%p1090) target = $region56
        $region55: #{tpu_custom_call.1} parent=51 // pred_region
          %s1094 = ssub.s32 256, 256
          %1095 = vsyncadd %s1086, %s1094
          %s1096 = smul.addr %s22, 2
          %s1097 = smul.addr %s1096, 128
          %s1098 = scalar_lea.hbm %s8, %s1097
          %s1100 = sshll.u32 %s1089, 4
          %s1101 = int_to_ptr.vmem [resolvable:$true] %s1100
          %1103 = dma.vmem_to_hbm [thread:$0]  %s1101, 256, %s1098, %s1086
        $region56: #{tpu_custom_call.1} parent=51 // pred_fallthru
          _
      $region52: #{tpu_custom_call.1} parent=5 // pred_fallthru
        _
      %p1104 = scmp.le.s32.totalorder 2, %s17
      // Predicated region
      $region57: #{tpu_custom_call.1} parent=5 // pred_check
        %p1105 = pneg %p1104
      $region58: #{tpu_custom_call.1} parent=5 // pred_check_branch
        %1107 = sbr.rel (%p1105) target = $region60
      $region59: #{tpu_custom_call.1} parent=5 // pred_region
        %s1108 = ssub.s32 %s17, 2
        // Predicated region
        $region61: #{tpu_custom_call.1} parent=59 // pred_check
          %p1109 = pneg %p219
        $region62: #{tpu_custom_call.1} parent=59 // pred_check_branch
          %1111 = sbr.rel (%p1109) target = $region64
        $region63: #{tpu_custom_call.1} parent=59 // pred_region
          %s1112 = sand.u32 %s204, 1
          %s1113 = scalar_lea.sflag [#allocation3], %s1112
          %s1114 = sand.u32 %s204, 1
          %s1115 = smul.addr %s1114, 16
          %s1116 = scalar_lea.vmem [#allocation2], %s1115
          %1117 = dma.done %s1113, 256
        $region64: #{tpu_custom_call.1} parent=59 // pred_fallthru
          _
      $region60: #{tpu_custom_call.1} parent=5 // pred_fallthru
        _
    $region6: #{tpu_custom_call.1} parent=1 // loop_footer
      %s21 = sadd.s32 1, %s17
    $region7: #{tpu_custom_call.1} parent=1 // loop_footer_branch
      %16 = sbr.rel target = $region3
    $region8: #{tpu_custom_call.1} parent=1 // loop_exit
      _
    %1118 = vsyncpa [#allocation3], 1
    %s1119 = scalar_lea.sflag [#allocation3], 1
    %1120 = vsyncpa %s1119, 1

</llo_original>
